<compile_context>
chip_gen: v6e
topology: v6e:2x2x1
jax: 0.10.0
libtpu: 0.0.40
codegen_flags: <defaults>
</compile_context>

<pallas_src>
import math

import jax
import jax.numpy as jnp
from jax.experimental import pallas as pl
from jax.experimental.pallas import tpu as pltpu

_LANES = 128
_SUBLANES = 8
_TARGET_BLOCK_ROWS = 8192              # 8192 rows x 128 lanes x 4 B = 4 MiB/block
_VMEM_LIMIT_BYTES = 32 * 1024 * 1024


def _copy_kernel(pattern_ref, o_ref):
    # Pure copy of the resident (tr, 128) pattern tile into the current output
    # block: body is vld+vst only, kernel is output-DMA (HBM write) bound.
    o_ref[...] = pattern_ref[...]


def _lcm(a, b):
    return a * b // math.gcd(a, b)


def _pattern_rows(num_rows, n, dtype):
    """First `num_rows` 128-lane rows of the flattened adjacency pattern.

    Flat element f of the (B, n, n) output equals base[f mod n*n], where `base`
    is the flattened (n, n) "ones on the two off-diagonal MxM blocks" matrix.
    Built from one period + tile, so no large iota / overflow-prone index math.
    """
    n2 = n * n
    m = n // 2
    idx = jnp.arange(n2, dtype=jnp.int32)
    i = idx // n
    j = idx - i * n
    base = ((i < m) ^ (j < m)).astype(dtype)          # one period, shape (n*n,)
    reps = -(-(num_rows * _LANES) // n2)              # ceil (Python int, trace time)
    flat = jnp.tile(base, reps)[: num_rows * _LANES]
    return flat.reshape(num_rows, _LANES)


def _choose_block_rows(rows, period_rows):
    """Pick per-block row count. Returns (block_rows, grid_invariant_content)."""
    if rows <= _TARGET_BLOCK_ROWS:
        return rows, True                              # single full-extent block
    unit = _lcm(period_rows, _SUBLANES)
    if unit > _TARGET_BLOCK_ROWS:
        # Period too large to keep block contents identical within the VMEM
        # budget: stream the full precomputed pattern block-by-block instead.
        return _TARGET_BLOCK_ROWS, False
    cap = min(_TARGET_BLOCK_ROWS, max(unit, rows // 2))
    tr = (cap // unit) * unit
    # Prefer a block size that divides `rows` (no masked ragged tail), but only
    # if that does not shrink blocks below half the target size.
    t = tr
    while t >= unit and rows % t != 0:
        t -= unit
    if t >= unit and t >= tr // 2:
        tr = t
    return tr, True


def adj_inter_generator(features, num_modalities, dtype=jnp.float32):
    """JAX/Pallas equivalent of adjInterGenerator(num_modalities)(features)."""
    batch_size = features.shape[0]
    n = 2 * num_modalities
    total = batch_size * n * n
    if total == 0:
        return jnp.zeros((batch_size, n, n), dtype)

    n2 = n * n
    rows = pl.cdiv(total, _LANES)               # lane-dense rows (padded if needed)
    period_rows = n2 // math.gcd(n2, _LANES)    # pattern period, in 128-lane rows
    tr, invariant = _choose_block_rows(rows, period_rows)
    grid = (pl.cdiv(rows, tr),)

    if invariant:
        # One (tr, 128) tile; every output block gets identical content (block
        # start row is a multiple of the period), so the constant index_map
        # keeps it resident in VMEM across the whole grid (single input DMA).
        pattern = _pattern_rows(tr, n, dtype)
        in_spec = pl.BlockSpec((tr, _LANES), lambda r: (0, 0))
    else:
        # Degenerate fallback (huge n): stream the full precomputed pattern
        # through the same copy kernel block-by-block.
        pattern = _pattern_rows(rows, n, dtype)
        in_spec = pl.BlockSpec((tr, _LANES), lambda r: (r, 0))

    flat = pl.pallas_call(
        _copy_kernel,
        out_shape=jax.ShapeDtypeStruct((rows, _LANES), dtype),
        grid=grid,
        in_specs=[in_spec],
        out_specs=pl.BlockSpec((tr, _LANES), lambda r: (r, 0)),
        compiler_params=pltpu.CompilerParams(
            dimension_semantics=("parallel",),
            vmem_limit_bytes=_VMEM_LIMIT_BYTES,
        ),
    )(pattern)

    if total % _LANES == 0:
        return flat.reshape(batch_size, n, n)          # contiguous -> free reshape
    return flat.reshape(-1)[:total].reshape(batch_size, n, n)


def _reference(features, num_modalities):
    """Plain-JAX reference mirroring the PyTorch double loop, for verification."""
    b = features.shape[0]
    n = 2 * num_modalities
    adj = jnp.zeros((n, n), jnp.float32)
    adj = adj.at[:num_modalities, num_modalities:].set(1.0)
    adj = adj.at[num_modalities:, :num_modalities].set(1.0)
    return jnp.broadcast_to(adj, (b, n, n))


if __name__ == "__main__":
    key = jax.random.PRNGKey(0)
    batch, num_modalities, feat_dim = 2, 4, 32
    # `features` shape only matters through its batch dimension (as in PyTorch).
    features = jax.random.normal(
        key, (batch, num_modalities, feat_dim), dtype=jnp.float32
    )

    out = jax.block_until_ready(adj_inter_generator(features, num_modalities))
    ref = _reference(features, num_modalities)
    assert out.shape == (batch, 2 * num_modalities, 2 * num_modalities)
    assert out.dtype == jnp.float32
    assert jnp.array_equal(out, ref)

    # Multi-block lane-dense path: n=16, B=8192 -> rows=16384 -> 2 x 4 MiB blocks.
    feats_big = jnp.zeros((8192, 1, 1), jnp.float32)
    out_big = jax.block_until_ready(adj_inter_generator(feats_big, 8))
    assert jnp.array_equal(out_big, _reference(feats_big, 8))

    # Padded path (B*N*N = 108, not a multiple of 128): lane-dense + wrapper slice.
    feats_odd = jnp.zeros((3, 2, 2), jnp.float32)
    out_odd = jax.block_until_ready(adj_inter_generator(feats_odd, 3))
    assert jnp.array_equal(out_odd, _reference(feats_odd, 3))

    print("KERNEL_OK")
</pallas_src>

<mosaic_0001>
module attributes {stable_mosaic.version = 11 : i64} {
  func.func @_copy_kernel(%arg0: i32, %arg1: memref<1x128xf32, #tpu.memory_space<vmem>>, %arg2: memref<1x128xf32, #tpu.memory_space<vmem>>) attributes {dimension_semantics = [#tpu.dimension_semantics<parallel>], iteration_bounds = array<i64: 1>, scalar_prefetch = 0 : i64, scratch_operands = 0 : i64, tpu.core_type = #tpu.core_type<tc>, window_params = [{pipeline_mode = #tpu.pipeline_mode<synchronous>, transform_indices = @transform_0, window_bounds = array<i64: 1, 128>}, {transform_indices = @transform_1, window_bounds = array<i64: 1, 128>}]} {
    %c0 = arith.constant 0 : index
    %c0_0 = arith.constant 0 : index
    %0 = vector.load %arg1[%c0, %c0_0] : memref<1x128xf32, #tpu.memory_space<vmem>>, vector<1x128xf32>
    %c0_1 = arith.constant 0 : index
    %c0_2 = arith.constant 0 : index
    %1 = vector.load %arg2[%c0_1, %c0_2] : memref<1x128xf32, #tpu.memory_space<vmem>>, vector<1x128xf32>
    tpu.vector_store %arg2[%c0_1, %c0_2], %0 {strides = array<i32>} : memref<1x128xf32, #tpu.memory_space<vmem>>, vector<1x128xf32>,
    return
  }
  func.func @transform_0(%arg0: i32) -> (i32, i32) {
    %c0_i32 = arith.constant 0 : i32
    %c0_i32_0 = arith.constant 0 : i32
    %c0_i32_1 = arith.constant 0 : i32
    return %c0_i32, %c0_i32_0 : i32, i32
  }
  func.func @transform_1(%arg0: i32) -> (i32, i32) {
    %c0_i32 = arith.constant 0 : i32
    %c0_i32_0 = arith.constant 0 : i32
    return %arg0, %c0_i32 : i32, i32
  }
}

</mosaic_0001>

<llo_original>
// kernel: tpu_custom_call.1
$region0: #{tpu_custom_call.1}
  #allocation0 [shape = 'u32[]', space=smem, size = 0x4, offset = 0x4, fixed_abs, tag = 'smem constant byte address 0x4 - core index']
  #allocation1 [shape = 'u32[144,128]{1,0:T(1,128)}', space=vmem, size = 0x12000, scoped, tag = 'internal scratch']
  %s0 = inlined_call_operand.hbm [shape: f32[1,128], index: 0, kind: input, shape index: {}]
  %s1 = inlined_call_operand.hbm [shape: f32[1,128], index: 1, kind: output, shape index: {}]
  %s2 = sld [smem:[#allocation0]]
  $region18: #{tpu_custom_call.1} parent=0
    _
  %s4 = ssub.s32 1, %s2
  %s5 = scalar_select 0, %s4, %s2
  $region1: #{tpu_custom_call.1} parent=0
    #allocation2 [shape = 'u8[512]{0}', space=vmem, size = 0x400, scoped, tag = 'input window, operand 0, single buffered']
    #allocation3 [shape = 's32[1]{0}', space=sflag, size = 0x4, scoped, tag = 'scoped memory for tpu_custom_call.1']
    #allocation4 [shape = 's32[1]{0}', space=sflag, size = 0x4, scoped, tag = 'scoped memory for tpu_custom_call.1']
    #allocation5 [shape = 'u8[512]{0}', space=vmem, size = 0x400, scoped, tag = 'output window, operand 0, single buffered']
    %6 = vsyncpa [#allocation3], 0
    %7 = vsyncpa [#allocation4], 0
    // Predicated region
    $region2: #{tpu_custom_call.1} parent=1 // pred_check
      _
    $region3: #{tpu_custom_call.1} parent=1 // pred_check_branch
      %9 = sbr.rel (0) target = $region5
    $region4: #{tpu_custom_call.1} parent=1 // pred_region
      %s11 = ssub.s32 16, 16
      %12 = vsyncadd [#allocation3], %s11
      %s14 = sshll.u32 [#allocation2], 4
      %s15 = int_to_ptr.vmem [resolvable:$true] %s14
      %17 = dma.hbm_to_vmem [thread:$0]  %s0, 16, %s15, [#allocation3]
    $region5: #{tpu_custom_call.1} parent=1 // pred_fallthru
      _
    // Predicated region
    $region6: #{tpu_custom_call.1} parent=1 // pred_check
      _
    $region7: #{tpu_custom_call.1} parent=1 // pred_check_branch
      %19 = sbr.rel (0) target = $region9
    $region8: #{tpu_custom_call.1} parent=1 // pred_region
      %20 = dma.done [#allocation3], 16
    $region9: #{tpu_custom_call.1} parent=1 // pred_fallthru
      _
    %v21 = vld [vmem:[#allocation2] sm:$0x1]
    %22 = vst [vmem:[#allocation5] sm:$0x1] %v21
    // Predicated region
    $region10: #{tpu_custom_call.1} parent=1 // pred_check
      _
    $region11: #{tpu_custom_call.1} parent=1 // pred_check_branch
      %24 = sbr.rel (0) target = $region13
    $region12: #{tpu_custom_call.1} parent=1 // pred_region
      %s26 = ssub.s32 16, 16
      %27 = vsyncadd [#allocation4], %s26
      %s29 = sshll.u32 [#allocation5], 4
      %s30 = int_to_ptr.vmem [resolvable:$true] %s29
      %32 = dma.vmem_to_hbm [thread:$0]  %s30, 16, %s1, [#allocation4]
    $region13: #{tpu_custom_call.1} parent=1 // pred_fallthru
      _
    // Predicated region
    $region14: #{tpu_custom_call.1} parent=1 // pred_check
      _
    $region15: #{tpu_custom_call.1} parent=1 // pred_check_branch
      %34 = sbr.rel (0) target = $region17
    $region16: #{tpu_custom_call.1} parent=1 // pred_region
      %35 = dma.done [#allocation4], 16
    $region17: #{tpu_custom_call.1} parent=1 // pred_fallthru
      _
    %36 = vsyncpa [#allocation3], 1
    %37 = vsyncpa [#allocation4], 1

</llo_original>
